<compile_context>
chip_gen: v5e
topology: v5e:2x2
jax: 0.10.0
libtpu: 0.0.40
codegen_flags: <defaults>
</compile_context>

<pallas_src>
import functools

import jax
import jax.numpy as jnp
from jax.experimental import pallas as pl
from jax.experimental.pallas import tpu as pltpu


def _ceil_to(a, b):
    return ((a + b - 1) // b) * b


def _pad2(a, rows, cols):
    pr, pc = rows - a.shape[0], cols - a.shape[1]
    if pr == 0 and pc == 0:
        return a
    return jnp.pad(a, ((0, pr), (0, pc)))


def _lora_linear_kernel(x_ref, wt_ref, b_ref, a_ref, lb_ref, o_ref,
                        acc_ref, xa_ref):
    k = pl.program_id(2)

    @pl.when(k == 0)
    def _():
        acc_ref[...] = jnp.zeros_like(acc_ref)
        xa_ref[...] = jnp.zeros_like(xa_ref)

    x = x_ref[...]                                                   # [tm, tk]
    # Frozen linear path (MXU), accumulated over K in f32.
    acc_ref[...] += jnp.dot(x, wt_ref[...],
                            preferred_element_type=jnp.float32)      # [tm, tn]
    # LoRA down-projection (rank is tiny -> ~r/tn extra MXU work), f32 accum.
    xa_ref[...] += jnp.dot(x, a_ref[...],
                           preferred_element_type=jnp.float32)       # [tm, r_p]

    @pl.when(k == pl.num_programs(2) - 1)
    def _():
        lb = lb_ref[...]                                             # [r_p, tn]
        # Scale (alpha/rank) already folded into lora_B in the wrapper.
        lora = jnp.dot(xa_ref[...].astype(lb.dtype), lb,
                       preferred_element_type=jnp.float32)           # [tm, tn]
        o_ref[...] = (acc_ref[...] + b_ref[...] + lora).astype(o_ref.dtype)


@functools.partial(jax.jit,
                   static_argnames=("alpha", "tm", "tn", "tk", "compute_dtype"))
def lora_linear(x, w_t, bias, lora_a, lora_b, *, alpha=1.0,
                tm=256, tn=256, tk=512, compute_dtype=None):
    """x: [..., in_dim] -> [..., out_dim].

    w_t: [in_dim, out_dim] (pre-transposed nn.Linear weight), bias: [out_dim],
    lora_a: [in_dim, rank], lora_b: [rank, out_dim].
    """
    in_dim, out_dim = w_t.shape
    rank = lora_a.shape[1]
    scale = float(alpha) / float(rank)

    out_dtype = x.dtype
    if compute_dtype is None:
        compute_dtype = x.dtype  # pass jnp.bfloat16 for max MXU / HBM throughput

    lead = x.shape[:-1]
    m = 1
    for d in lead:
        m *= d
    x2 = x.reshape(m, in_dim)

    # Clamp tiles to the (padded) problem size; keep them TPU-tile aligned.
    tm = min(tm, _ceil_to(m, 8))
    tk = min(tk, _ceil_to(in_dim, 128))
    tn = min(tn, _ceil_to(out_dim, 128))

    m_p = _ceil_to(m, tm)
    k_p = _ceil_to(in_dim, tk)
    n_p = _ceil_to(out_dim, tn)
    r_p = _ceil_to(rank, 8)   # pad rank only to a sublane multiple

    # One-time parameter prep: fold LoRA scale into B, cast, zero-pad.
    x_p = _pad2(x2.astype(compute_dtype), m_p, k_p)
    wt_p = _pad2(w_t.astype(compute_dtype), k_p, n_p)
    a_p = _pad2(lora_a.astype(compute_dtype), k_p, r_p)
    b_p = _pad2((lora_b * scale).astype(compute_dtype), r_p, n_p)
    bias_p = _pad2(bias.astype(jnp.float32).reshape(1, out_dim), 1, n_p)

    grid = (m_p // tm, n_p // tn, k_p // tk)

    # Explicit VMEM budget (double-buffered input/output tiles + scratch).
    cbytes = jnp.dtype(compute_dtype).itemsize
    est = (2 * (tm * tk + tk * tn + tk * r_p + r_p * tn) * cbytes
           + 2 * tn * 4                                   # bias tiles (f32)
           + 2 * tm * tn * jnp.dtype(out_dtype).itemsize  # output tiles
           + (tm * tn + tm * r_p) * 4)                    # f32 accumulators
    vmem_limit = max(2 * est, 16 * 1024 * 1024)

    out2 = pl.pallas_call(
        _lora_linear_kernel,
        out_shape=jax.ShapeDtypeStruct((m_p, n_p), out_dtype),
        grid_spec=pltpu.PrefetchScalarGridSpec(
            num_scalar_prefetch=0,
            grid=grid,
            in_specs=[
                pl.BlockSpec((tm, tk), lambda i, j, k: (i, k)),   # x tile
                pl.BlockSpec((tk, tn), lambda i, j, k: (k, j)),   # W^T tile
                pl.BlockSpec((1, tn), lambda i, j, k: (0, j)),    # bias tile
                pl.BlockSpec((tk, r_p), lambda i, j, k: (k, 0)),  # lora_A tile
                pl.BlockSpec((r_p, tn), lambda i, j, k: (0, j)),  # lora_B tile
            ],
            out_specs=pl.BlockSpec((tm, tn), lambda i, j, k: (i, j)),
            scratch_shapes=[
                pltpu.VMEM((tm, tn), jnp.float32),   # base matmul accumulator
                pltpu.VMEM((tm, r_p), jnp.float32),  # x @ A accumulator
            ],
        ),
        compiler_params=pltpu.CompilerParams(
            dimension_semantics=("parallel", "parallel", "arbitrary"),
            vmem_limit_bytes=int(vmem_limit),
        ),
    )(x_p, wt_p, bias_p, a_p, b_p)

    return out2[:m, :out_dim].reshape(*lead, out_dim)


def _reference(x, w_t, bias, lora_a, lora_b, alpha):
    scale = alpha / lora_a.shape[1]
    return x @ w_t + bias + scale * ((x @ lora_a) @ lora_b)


if __name__ == "__main__":
    # Small shapes consistent with the module: batch=2, seq=8, hidden=32.
    batch, seq, in_dim, out_dim, rank, alpha = 2, 8, 32, 32, 4, 1.0

    key = jax.random.PRNGKey(0)
    kx, kw, kb, ka, kb2, kx2 = jax.random.split(key, 6)

    x = jax.random.normal(kx, (batch, seq, in_dim), dtype=jnp.float32)

    # Parameters (shapes follow nn.Linear / LoRALayer __init__).
    w = jax.random.normal(kw, (out_dim, in_dim), dtype=jnp.float32) * 0.1
    bias = jax.random.normal(kb, (out_dim,), dtype=jnp.float32) * 0.1
    lora_a = jax.random.normal(ka, (in_dim, rank), dtype=jnp.float32) * (1.0 / rank)
    lora_b_init = jnp.zeros((rank, out_dim), dtype=jnp.float32)  # module init
    w_t = jnp.transpose(w)  # [in_dim, out_dim]

    # 1) Matches the module at init (lora_B == 0 -> pure frozen linear).
    out = lora_linear(x, w_t, bias, lora_a, lora_b_init, alpha=alpha)
    out = jax.block_until_ready(out)
    ref = _reference(x, w_t, bias, lora_a, lora_b_init, alpha)
    assert out.shape == (batch, seq, out_dim)
    assert jnp.allclose(out, ref, atol=1e-5, rtol=1e-5), "mismatch (init B=0)"

    # 2) Exercise the LoRA path (non-zero B) and tail padding (seq=7 -> M=14).
    x_odd = jax.random.normal(kx2, (batch, 7, in_dim), dtype=jnp.float32)
    lora_b_nz = jax.random.normal(kb2, (rank, out_dim), dtype=jnp.float32) * 0.1
    out2 = lora_linear(x_odd, w_t, bias, lora_a, lora_b_nz, alpha=alpha)
    out2 = jax.block_until_ready(out2)
    ref2 = _reference(x_odd, w_t, bias, lora_a, lora_b_nz, alpha)
    assert out2.shape == (batch, 7, out_dim)
    assert jnp.allclose(out2, ref2, atol=1e-5, rtol=1e-5), "mismatch (LoRA path)"

    print("KERNEL_OK")
</pallas_src>

<mosaic_0001>
module attributes {stable_mosaic.version = 11 : i64} {
  func.func @_lora_linear_kernel(%arg0: i32, %arg1: i32, %arg2: i32, %arg3: memref<16x128xf32, #tpu.memory_space<vmem>>, %arg4: memref<128x128xf32, #tpu.memory_space<vmem>>, %arg5: memref<1x128xf32, #tpu.memory_space<vmem>>, %arg6: memref<128x8xf32, #tpu.memory_space<vmem>>, %arg7: memref<8x128xf32, #tpu.memory_space<vmem>>, %arg8: memref<16x128xf32, #tpu.memory_space<vmem>>, %arg9: memref<16x128xf32, #tpu.memory_space<vmem>>, %arg10: memref<16x8xf32, #tpu.memory_space<vmem>>) attributes {dimension_semantics = [#tpu.dimension_semantics<parallel>, #tpu.dimension_semantics<parallel>, #tpu.dimension_semantics<arbitrary>], iteration_bounds = array<i64: 1, 1, 1>, scalar_prefetch = 0 : i64, scratch_operands = 2 : i64, tpu.core_type = #tpu.core_type<tc>, window_params = [{transform_indices = @transform_0, window_bounds = array<i64: 16, 128>}, {transform_indices = @transform_1, window_bounds = array<i64: 128, 128>}, {transform_indices = @transform_2, window_bounds = array<i64: 1, 128>}, {transform_indices = @transform_3, window_bounds = array<i64: 128, 8>}, {transform_indices = @transform_4, window_bounds = array<i64: 8, 128>}, {transform_indices = @transform_5, window_bounds = array<i64: 16, 128>}]} {
    %c0_i32 = arith.constant 0 : i32
    %0 = arith.cmpi eq, %arg2, %c0_i32 : i32
    %1 = arith.extui %0 : i1 to i32
    %c0_i32_0 = arith.constant 0 : i32
    %2 = arith.cmpi ne, %1, %c0_i32_0 : i32
    scf.if %2 {
      %cst_17 = arith.constant 0.000000e+00 : f32
      %17 = vector.broadcast %cst_17 : f32 to vector<16x128xf32>
      %c0_18 = arith.constant 0 : index
      %c0_19 = arith.constant 0 : index
      %18 = vector.load %arg9[%c0_18, %c0_19] : memref<16x128xf32, #tpu.memory_space<vmem>>, vector<16x128xf32>
      tpu.vector_store %arg9[%c0_18, %c0_19], %17 {strides = array<i32>} : memref<16x128xf32, #tpu.memory_space<vmem>>, vector<16x128xf32>,
      %cst_20 = arith.constant 0.000000e+00 : f32
      %19 = vector.broadcast %cst_20 : f32 to vector<16x8xf32>
      %c0_21 = arith.constant 0 : index
      %c0_22 = arith.constant 0 : index
      %20 = vector.load %arg10[%c0_21, %c0_22] : memref<16x8xf32, #tpu.memory_space<vmem>>, vector<16x8xf32>
      tpu.vector_store %arg10[%c0_21, %c0_22], %19 {strides = array<i32>} : memref<16x8xf32, #tpu.memory_space<vmem>>, vector<16x8xf32>,
    } else {
    }
    %c0 = arith.constant 0 : index
    %c0_1 = arith.constant 0 : index
    %3 = vector.load %arg3[%c0, %c0_1] : memref<16x128xf32, #tpu.memory_space<vmem>>, vector<16x128xf32>
    %c0_2 = arith.constant 0 : index
    %c0_3 = arith.constant 0 : index
    %4 = vector.load %arg9[%c0_2, %c0_3] : memref<16x128xf32, #tpu.memory_space<vmem>>, vector<16x128xf32>
    %c0_4 = arith.constant 0 : index
    %c0_5 = arith.constant 0 : index
    %5 = vector.load %arg4[%c0_4, %c0_5] : memref<128x128xf32, #tpu.memory_space<vmem>>, vector<128x128xf32>
    %cst = arith.constant dense<0.000000e+00> : vector<16x128xf32>
    %6 = tpu.matmul %3, %5, %cst {dimension_numbers = #tpu.dot_dimension_numbers<[1], [0], [0], [1], [0, 0, 1, 1], [], []>} : vector<16x128xf32>, vector<128x128xf32>, vector<16x128xf32> -> vector<16x128xf32>
    %7 = arith.addf %4, %6 : vector<16x128xf32>
    %c0_6 = arith.constant 0 : index
    %c0_7 = arith.constant 0 : index
    %8 = vector.load %arg9[%c0_6, %c0_7] : memref<16x128xf32, #tpu.memory_space<vmem>>, vector<16x128xf32>
    tpu.vector_store %arg9[%c0_6, %c0_7], %7 {strides = array<i32>} : memref<16x128xf32, #tpu.memory_space<vmem>>, vector<16x128xf32>,
    %c0_8 = arith.constant 0 : index
    %c0_9 = arith.constant 0 : index
    %9 = vector.load %arg10[%c0_8, %c0_9] : memref<16x8xf32, #tpu.memory_space<vmem>>, vector<16x8xf32>
    %c0_10 = arith.constant 0 : index
    %c0_11 = arith.constant 0 : index
    %10 = vector.load %arg6[%c0_10, %c0_11] : memref<128x8xf32, #tpu.memory_space<vmem>>, vector<128x8xf32>
    %cst_12 = arith.constant dense<0.000000e+00> : vector<16x8xf32>
    %11 = tpu.matmul %3, %10, %cst_12 {dimension_numbers = #tpu.dot_dimension_numbers<[1], [0], [0], [1], [0, 0, 1, 1], [], []>} : vector<16x128xf32>, vector<128x8xf32>, vector<16x8xf32> -> vector<16x8xf32>
    %12 = arith.addf %9, %11 : vector<16x8xf32>
    %c0_13 = arith.constant 0 : index
    %c0_14 = arith.constant 0 : index
    %13 = vector.load %arg10[%c0_13, %c0_14] : memref<16x8xf32, #tpu.memory_space<vmem>>, vector<16x8xf32>
    tpu.vector_store %arg10[%c0_13, %c0_14], %12 {strides = array<i32>} : memref<16x8xf32, #tpu.memory_space<vmem>>, vector<16x8xf32>,
    %c0_i32_15 = arith.constant 0 : i32
    %14 = arith.cmpi eq, %arg2, %c0_i32_15 : i32
    %15 = arith.extui %14 : i1 to i32
    %c0_i32_16 = arith.constant 0 : i32
    %16 = arith.cmpi ne, %15, %c0_i32_16 : i32
    scf.if %16 {
      %c0_17 = arith.constant 0 : index
      %c0_18 = arith.constant 0 : index
      %17 = vector.load %arg7[%c0_17, %c0_18] : memref<8x128xf32, #tpu.memory_space<vmem>>, vector<8x128xf32>
      %c0_19 = arith.constant 0 : index
      %c0_20 = arith.constant 0 : index
      %18 = vector.load %arg10[%c0_19, %c0_20] : memref<16x8xf32, #tpu.memory_space<vmem>>, vector<16x8xf32>
      %cst_21 = arith.constant dense<0.000000e+00> : vector<16x128xf32>
      %19 = tpu.matmul %18, %17, %cst_21 {dimension_numbers = #tpu.dot_dimension_numbers<[1], [0], [0], [1], [0, 0, 1, 1], [], []>} : vector<16x8xf32>, vector<8x128xf32>, vector<16x128xf32> -> vector<16x128xf32>
      %c0_22 = arith.constant 0 : index
      %c0_23 = arith.constant 0 : index
      %20 = vector.load %arg9[%c0_22, %c0_23] : memref<16x128xf32, #tpu.memory_space<vmem>>, vector<16x128xf32>
      %c0_24 = arith.constant 0 : index
      %c0_25 = arith.constant 0 : index
      %21 = vector.load %arg5[%c0_24, %c0_25] : memref<1x128xf32, #tpu.memory_space<vmem>>, vector<1x128xf32>
      %22 = vector.broadcast %21 : vector<1x128xf32> to vector<16x128xf32>
      %23 = arith.addf %20, %22 : vector<16x128xf32>
      %24 = arith.addf %23, %19 : vector<16x128xf32>
      %c0_26 = arith.constant 0 : index
      %c0_27 = arith.constant 0 : index
      %25 = vector.load %arg8[%c0_26, %c0_27] : memref<16x128xf32, #tpu.memory_space<vmem>>, vector<16x128xf32>
      tpu.vector_store %arg8[%c0_26, %c0_27], %24 {strides = array<i32>} : memref<16x128xf32, #tpu.memory_space<vmem>>, vector<16x128xf32>,
    } else {
    }
    return
  }
  func.func @transform_0(%arg0: i32, %arg1: i32, %arg2: i32) -> (i32, i32) {
    %c0_i32 = arith.constant 0 : i32
    return %arg0, %arg2 : i32, i32
  }
  func.func @transform_1(%arg0: i32, %arg1: i32, %arg2: i32) -> (i32, i32) {
    %c0_i32 = arith.constant 0 : i32
    return %arg2, %arg1 : i32, i32
  }
  func.func @transform_2(%arg0: i32, %arg1: i32, %arg2: i32) -> (i32, i32) {
    %c0_i32 = arith.constant 0 : i32
    %c0_i32_0 = arith.constant 0 : i32
    return %c0_i32, %arg1 : i32, i32
  }
  func.func @transform_3(%arg0: i32, %arg1: i32, %arg2: i32) -> (i32, i32) {
    %c0_i32 = arith.constant 0 : i32
    %c0_i32_0 = arith.constant 0 : i32
    return %arg2, %c0_i32 : i32, i32
  }
  func.func @transform_4(%arg0: i32, %arg1: i32, %arg2: i32) -> (i32, i32) {
    %c0_i32 = arith.constant 0 : i32
    %c0_i32_0 = arith.constant 0 : i32
    return %c0_i32, %arg1 : i32, i32
  }
  func.func @transform_5(%arg0: i32, %arg1: i32, %arg2: i32) -> (i32, i32) {
    %c0_i32 = arith.constant 0 : i32
    return %arg0, %arg1 : i32, i32
  }
}

</mosaic_0001>

<llo_original>
// kernel: lora_linear.1
$region0: #{lora_linear.1}
  #allocation0 [shape = 'u32[]', space=smem, size = 0x4, offset = 0x4, fixed_abs, tag = 'smem constant byte address 0x4 - core index']
  #allocation1 [shape = 'u32[72,128]{1,0:T(1,128)}', space=vmem, size = 0x9000, scoped, tag = 'internal scratch']
  #allocation2 [shape = 'f32[16,128]{1,0:T(8,128)}', space=vmem, size = 0x2000, scoped, tag = 'scratch operand']
  #allocation3 [shape = 'f32[16,8]{1,0:T(8,128)}', space=vmem, size = 0x2000, scoped, tag = 'scratch operand']
  %s0 = inlined_call_operand.vmem [shape: f32[16,128], index: 0, kind: input, shape index: {}]
  %s1 = inlined_call_operand.vmem [shape: f32[128,128], index: 1, kind: input, shape index: {}]
  %s2 = inlined_call_operand.vmem [shape: f32[1,128], index: 2, kind: input, shape index: {}]
  %s3 = inlined_call_operand.vmem [shape: f32[128,8], index: 3, kind: input, shape index: {}]
  %s4 = inlined_call_operand.vmem [shape: f32[8,128], index: 4, kind: input, shape index: {}]
  %s5 = inlined_call_operand.vmem [shape: f32[16,128], index: 5, kind: output, shape index: {}]
  %s6 = sld [smem:[#allocation0]]
  $region38: #{lora_linear.1} parent=0
    _
  %s8 = ssub.s32 1, %s6
  %s9 = scalar_select 0, %s8, %s6
  // Predicated region
  $region2: #{lora_linear.1} parent=0 // pred_check
    _
  $region3: #{lora_linear.1} parent=0 // pred_check_branch
    %11 = sbr.rel (0) target = $region5
  $region4: #{lora_linear.1} parent=0 // pred_region
    _
  $region5: #{lora_linear.1} parent=0 // pred_fallthru
    _
  // Predicated region
  $region6: #{lora_linear.1} parent=0 // pred_check
    _
  $region7: #{lora_linear.1} parent=0 // pred_check_branch
    %13 = sbr.rel (0) target = $region9
  $region8: #{lora_linear.1} parent=0 // pred_region
    _
  $region9: #{lora_linear.1} parent=0 // pred_fallthru
    _
  // Predicated region
  $region10: #{lora_linear.1} parent=0 // pred_check
    _
  $region11: #{lora_linear.1} parent=0 // pred_check_branch
    %15 = sbr.rel (0) target = $region13
  $region12: #{lora_linear.1} parent=0 // pred_region
    _
  $region13: #{lora_linear.1} parent=0 // pred_fallthru
    _
  // Predicated region
  $region14: #{lora_linear.1} parent=0 // pred_check
    _
  $region15: #{lora_linear.1} parent=0 // pred_check_branch
    %17 = sbr.rel (0) target = $region17
  $region16: #{lora_linear.1} parent=0 // pred_region
    _
  $region17: #{lora_linear.1} parent=0 // pred_fallthru
    _
  // Predicated region
  $region18: #{lora_linear.1} parent=0 // pred_check
    _
  $region19: #{lora_linear.1} parent=0 // pred_check_branch
    %19 = sbr.rel (0) target = $region21
  $region20: #{lora_linear.1} parent=0 // pred_region
    _
  $region21: #{lora_linear.1} parent=0 // pred_fallthru
    _
  %p20 = scmp.eq.s32.totalorder 0, 0
  // Predicated region
  $region22: #{lora_linear.1} parent=0 // pred_check
    %p21 = pneg %p20
  $region23: #{lora_linear.1} parent=0 // pred_check_branch
    %23 = sbr.rel (%p21) target = $region25
  $region24: #{lora_linear.1} parent=0 // pred_region
    %24 = vst [vmem:[#allocation2] sm:$0xff] 0.0
    %25 = vst [vmem:[#allocation2 + $0x8] sm:$0xff] 0.0
    %vm26 = vcmask 64512
    %27 = vst.msk [vmem:[#allocation3] sm:$0xff] %vm26, 0.0
    %28 = vst.msk [vmem:[#allocation3 + $0x8] sm:$0xff] %vm26, 0.0
  $region25: #{lora_linear.1} parent=0 // pred_fallthru
    _
  %v29 = vld [vmem:[%s0] sm:$0xff]
  %v30 = vld [vmem:[%s0 + $0x8] sm:$0xff]
  %v31 = vld [vmem:[#allocation2] sm:$0xff]
  %v32 = vld [vmem:[#allocation2 + $0x8] sm:$0xff]
  %v33 = vld [vmem:[%s1] sm:$0xff]
  %v34 = vld [vmem:[%s1 + $0x8] sm:$0xff]
  %v35 = vld [vmem:[%s1 + $0x10] sm:$0xff]
  %v36 = vld [vmem:[%s1 + $0x18] sm:$0xff]
  %v37 = vld [vmem:[%s1 + $0x20] sm:$0xff]
  %v38 = vld [vmem:[%s1 + $0x28] sm:$0xff]
  %v39 = vld [vmem:[%s1 + $0x30] sm:$0xff]
  %v40 = vld [vmem:[%s1 + $0x38] sm:$0xff]
  %v41 = vld [vmem:[%s1 + $0x40] sm:$0xff]
  %v42 = vld [vmem:[%s1 + $0x48] sm:$0xff]
  %v43 = vld [vmem:[%s1 + $0x50] sm:$0xff]
  %v44 = vld [vmem:[%s1 + $0x58] sm:$0xff]
  %v45 = vld [vmem:[%s1 + $0x60] sm:$0xff]
  %v46 = vld [vmem:[%s1 + $0x68] sm:$0xff]
  %v47 = vld [vmem:[%s1 + $0x70] sm:$0xff]
  %v48 = vld [vmem:[%s1 + $0x78] sm:$0xff]
  %49 = vmatpush.msra.mxu0 %v48
  %50 = vmatpush.msra.mxu0 %v47
  %51 = vmatpush.msra.mxu0 %v46
  %52 = vmatpush.msra.mxu0 %v45
  %53 = vmatpush.msra.mxu0 %v44
  %54 = vmatpush.msra.mxu0 %v43
  %55 = vmatpush.msra.mxu0 %v42
  %56 = vmatpush.msra.mxu0 %v41
  %57 = vmatpush.msra.mxu0 %v40
  %58 = vmatpush.msra.mxu0 %v39
  %59 = vmatpush.msra.mxu0 %v38
  %60 = vmatpush.msra.mxu0 %v37
  %61 = vmatpush.msra.mxu0 %v36
  %62 = vmatpush.msra.mxu0 %v35
  %63 = vmatpush.msra.mxu0 %v34
  %64 = vmatpush.msra.mxu0 %v33
  %65 = vmatmul.f32.gmra.mxu0 %v29
  %v66 = vpop.f32.mrf.mxu0
  %v67 = vadd.f32 0.0, %v66
  %68 = vmatmul.f32.gmra.mxu0 %v30
  %v69 = vpop.f32.mrf.mxu0
  %v70 = vadd.f32 0.0, %v69
  %71 = vdwg.mxu0
  %v72 = vadd.f32 %v31, %v67
  %v73 = vadd.f32 %v32, %v70
  %74 = vst [vmem:[#allocation2] sm:$0xff] %v72
  %75 = vst [vmem:[#allocation2 + $0x8] sm:$0xff] %v73
  %v76 = vld [vmem:[#allocation3] sm:$0xff]
  %v77 = vld [vmem:[#allocation3 + $0x8] sm:$0xff]
  %v78 = vld [vmem:[%s3] sm:$0xff]
  %v79 = vld [vmem:[%s3 + $0x8] sm:$0xff]
  %v80 = vld [vmem:[%s3 + $0x10] sm:$0xff]
  %v81 = vld [vmem:[%s3 + $0x18] sm:$0xff]
  %v82 = vld [vmem:[%s3 + $0x20] sm:$0xff]
  %v83 = vld [vmem:[%s3 + $0x28] sm:$0xff]
  %v84 = vld [vmem:[%s3 + $0x30] sm:$0xff]
  %v85 = vld [vmem:[%s3 + $0x38] sm:$0xff]
  %v86 = vld [vmem:[%s3 + $0x40] sm:$0xff]
  %v87 = vld [vmem:[%s3 + $0x48] sm:$0xff]
  %v88 = vld [vmem:[%s3 + $0x50] sm:$0xff]
  %v89 = vld [vmem:[%s3 + $0x58] sm:$0xff]
  %v90 = vld [vmem:[%s3 + $0x60] sm:$0xff]
  %v91 = vld [vmem:[%s3 + $0x68] sm:$0xff]
  %v92 = vld [vmem:[%s3 + $0x70] sm:$0xff]
  %v93 = vld [vmem:[%s3 + $0x78] sm:$0xff]
  %94 = vmatpush.msra.mxu0 %v93
  %95 = vmatpush.msra.mxu0 %v92
  %96 = vmatpush.msra.mxu0 %v91
  %97 = vmatpush.msra.mxu0 %v90
  %98 = vmatpush.msra.mxu0 %v89
  %99 = vmatpush.msra.mxu0 %v88
  %100 = vmatpush.msra.mxu0 %v87
  %101 = vmatpush.msra.mxu0 %v86
  %102 = vmatpush.msra.mxu0 %v85
  %103 = vmatpush.msra.mxu0 %v84
  %104 = vmatpush.msra.mxu0 %v83
  %105 = vmatpush.msra.mxu0 %v82
  %106 = vmatpush.msra.mxu0 %v81
  %107 = vmatpush.msra.mxu0 %v80
  %108 = vmatpush.msra.mxu0 %v79
  %109 = vmatpush.msra.mxu0 %v78
  %110 = vmatmul.f32.gmra.mxu0 %v29
  %v111 = vpop.f32.mrf.mxu0
  %v112 = vadd.f32 0.0, %v111
  %113 = vmatmul.f32.gmra.mxu0 %v30
  %v114 = vpop.f32.mrf.mxu0
  %v115 = vadd.f32 0.0, %v114
  %116 = vdwg.mxu0
  %v117 = vadd.f32 %v76, %v112
  %v118 = vadd.f32 %v77, %v115
  %vm119 = vcmask 64512
  %120 = vst.msk [vmem:[#allocation3] sm:$0xff] %vm119, %v117
  %121 = vst.msk [vmem:[#allocation3 + $0x8] sm:$0xff] %vm119, %v118
  // Predicated region
  $region26: #{lora_linear.1} parent=0 // pred_check
    %p122 = pneg %p20
  $region27: #{lora_linear.1} parent=0 // pred_check_branch
    %124 = sbr.rel (%p122) target = $region29
  $region28: #{lora_linear.1} parent=0 // pred_region
    %v125 = vld [vmem:[%s4] sm:$0xff]
    %v126 = vld [vmem:[#allocation3] sm:$0xff]
    %v127 = vld [vmem:[#allocation3 + $0x8] sm:$0xff]
    %v129 = vsel %vm119, %v126, 0
    %v132 = vsel %vm119, %v127, 0
    %134 = vmatpush.msra.mxu0 0.0
    %135 = vmatpush.msra.mxu0 0.0
    %136 = vmatpush.msra.mxu0 0.0
    %137 = vmatpush.msra.mxu0 0.0
    %138 = vmatpush.msra.mxu0 0.0
    %139 = vmatpush.msra.mxu0 0.0
    %140 = vmatpush.msra.mxu0 0.0
    %141 = vmatpush.msra.mxu0 0.0
    %142 = vmatpush.msra.mxu0 0.0
    %143 = vmatpush.msra.mxu0 0.0
    %144 = vmatpush.msra.mxu0 0.0
    %145 = vmatpush.msra.mxu0 0.0
    %146 = vmatpush.msra.mxu0 0.0
    %147 = vmatpush.msra.mxu0 0.0
    %148 = vmatpush.msra.mxu0 0.0
    %149 = vmatpush.msra.mxu0 %v125
    %150 = vmatmul.f32.gmra.mxu0 %v129
    %v151 = vpop.f32.mrf.mxu0
    %v152 = vadd.f32 0.0, %v151
    %153 = vmatmul.f32.gmra.mxu0 %v132
    %v154 = vpop.f32.mrf.mxu0
    %v155 = vadd.f32 0.0, %v154
    %156 = vdwg.mxu0
    %v157 = vld [vmem:[#allocation2] sm:$0xff]
    %v158 = vld [vmem:[#allocation2 + $0x8] sm:$0xff]
    %v159 = vld [vmem:[%s2] sm:$0x1]
    %v161 = vperm.slane %v159, 0
    %v163 = vadd.f32 %v157, %v161
    %v164 = vadd.f32 %v158, %v161
    %v165 = vadd.f32 %v163, %v152
    %v166 = vadd.f32 %v164, %v155
    %167 = vst [vmem:[%s5] sm:$0xff] %v165
    %168 = vst [vmem:[%s5 + $0x8] sm:$0xff] %v166
  $region29: #{lora_linear.1} parent=0 // pred_fallthru
    _
  // Predicated region
  $region30: #{lora_linear.1} parent=0 // pred_check
    _
  $region31: #{lora_linear.1} parent=0 // pred_check_branch
    %170 = sbr.rel (0) target = $region33
  $region32: #{lora_linear.1} parent=0 // pred_region
    _
  $region33: #{lora_linear.1} parent=0 // pred_fallthru
    _
  // Predicated region
  $region34: #{lora_linear.1} parent=0 // pred_check
    _
  $region35: #{lora_linear.1} parent=0 // pred_check_branch
    %172 = sbr.rel (0) target = $region37
  $region36: #{lora_linear.1} parent=0 // pred_region
    _
  $region37: #{lora_linear.1} parent=0 // pred_fallthru
    _

</llo_original>
